<compile_context>
chip_gen: v7x
topology: tpu7x:2x2x1
jax: 0.10.0
libtpu: 0.0.40
codegen_flags: <defaults>
</compile_context>

<pallas_src>
import functools
from typing import NamedTuple

import jax
import jax.numpy as jnp
from jax.experimental import pallas as pl
from jax.experimental.pallas import tpu as pltpu  # noqa: F401  (TPU backend)


def _round_up(x: int, m: int) -> int:
    return ((x + m - 1) // m) * m


ROW_ALIGN = 16  # bf16 sublane tile height -> keep all slab row offsets aligned


class Layout(NamedTuple):
    """Static layout of the packed bf16 parameter slab (rows x L lanes)."""
    k1: int        # padded n_states lane width of x (multiple of 8)
    k2: int        # padded n_hidden contraction rows for w2/w3 (multiple of 16)
    L: int         # padded hidden/action lane width (multiple of 128)
    rows_w1: int   # rows reserved for w1 (multiple of 16)
    off_w1: int
    off_b1: int
    off_w2: int
    off_b2: int
    off_w3: int
    off_b3: int
    rows: int


def make_layout(n_states: int, n_hidden: int, n_actions: int) -> Layout:
    k1 = _round_up(n_states, 8)
    k2 = _round_up(n_hidden, ROW_ALIGN)
    L = max(_round_up(n_hidden, 128), _round_up(n_actions, 128))
    rows_w1 = _round_up(n_states, ROW_ALIGN)
    off_w1 = 0
    off_b1 = off_w1 + rows_w1          # bias lives in first row of its slot
    off_w2 = off_b1 + ROW_ALIGN
    off_b2 = off_w2 + k2
    off_w3 = off_b2 + ROW_ALIGN
    off_b3 = off_w3 + k2
    rows = off_b3 + ROW_ALIGN
    return Layout(k1, k2, L, rows_w1,
                  off_w1, off_b1, off_w2, off_b2, off_w3, off_b3, rows)


def pack_params(params, lay: Layout) -> jax.Array:
    """Pack w1,b1,w2,b2,w3,b3 into one zero-padded (rows, L) bf16 slab."""
    w1, b1 = params["w1"], params["b1"]   # (n_states, H), (H,)
    w2, b2 = params["w2"], params["b2"]   # (H, H), (H,)
    w3, b3 = params["w3"], params["b3"]   # (H, A), (A,)

    slab = jnp.zeros((lay.rows, lay.L), jnp.float32)
    slab = slab.at[lay.off_w1:lay.off_w1 + w1.shape[0], :w1.shape[1]].set(w1)
    slab = slab.at[lay.off_b1, :b1.shape[0]].set(b1)
    slab = slab.at[lay.off_w2:lay.off_w2 + w2.shape[0], :w2.shape[1]].set(w2)
    slab = slab.at[lay.off_b2, :b2.shape[0]].set(b2)
    slab = slab.at[lay.off_w3:lay.off_w3 + w3.shape[0], :w3.shape[1]].set(w3)
    slab = slab.at[lay.off_b3, :b3.shape[0]].set(b3)
    return slab.astype(jnp.bfloat16)


def pad_states(x, lay: Layout):
    """Pad (B, n_states) f32 states to (B_pad, k1) once (e.g. in the replay buffer)."""
    B, F = x.shape
    B_pad = _round_up(max(B, 1), 8)
    return jnp.pad(x.astype(jnp.float32), ((0, B_pad - B), (0, lay.k1 - F)))


# ----------------------------- kernel bodies --------------------------------

def _mlp_core(x, p_ref, lay: Layout, n_states: int):
    """3-layer MLP on one f32 activation block.

    x: (B_pad, k1) f32 value.  p_ref: (rows, L) bf16 slab ref.
    Returns (B_pad, L) f32 (padded lanes are exact zeros).
    """
    bp = x.shape[0]
    L, k2 = lay.L, lay.k2

    # Layer 1: only n_states (=4) real input features -> 4 broadcast VPU FMAs
    # instead of an MXU matmul (removes one MXU push/drain from the chain).
    w1 = p_ref[lay.off_w1:lay.off_w1 + lay.rows_w1, :].astype(jnp.float32)  # (16, L)
    b1 = p_ref[lay.off_b1:lay.off_b1 + 1, :].astype(jnp.float32)            # (1, L)
    h = jnp.broadcast_to(b1, (bp, L))
    for k in range(n_states):                      # static, unrolled
        h = h + x[:, k:k + 1] * w1[k:k + 1, :]
    h = jnp.maximum(h, 0.0)

    # Layer 2: bf16 MXU matmul, f32 accumulation.  Contract only the k2 real
    # (zero-padded) hidden lanes against the shrunken k2-row weight block.
    w2 = p_ref[lay.off_w2:lay.off_w2 + k2, :]                               # (k2, L) bf16
    b2 = p_ref[lay.off_b2:lay.off_b2 + 1, :].astype(jnp.float32)            # (1, L)
    h = jnp.dot(h[:, :k2].astype(jnp.bfloat16), w2,
                preferred_element_type=jnp.float32) + b2
    h = jnp.maximum(h, 0.0)

    # Layer 3 (output head).
    w3 = p_ref[lay.off_w3:lay.off_w3 + k2, :]                               # (k2, L) bf16
    b3 = p_ref[lay.off_b3:lay.off_b3 + 1, :].astype(jnp.float32)            # (1, L)
    return jnp.dot(h[:, :k2].astype(jnp.bfloat16), w3,
                   preferred_element_type=jnp.float32) + b3


def _net_kernel(x_ref, p_ref, o_ref, *, lay: Layout, n_states: int):
    o_ref[...] = _mlp_core(x_ref[...], p_ref, lay, n_states)


def _dual_kernel(xs_ref, xn_ref, pe_ref, pt_ref, qe_ref, qn_ref,
                 *, lay: Layout, n_states: int):
    # Fused DQN learn-step hot path: eval_net(s) and target_net(s') in one call.
    qe_ref[...] = _mlp_core(xs_ref[...], pe_ref, lay, n_states)
    qn_ref[...] = _mlp_core(xn_ref[...], pt_ref, lay, n_states)
    # TODO(synk): the TD target (r + gamma * max_a q_next) could also be fused
    # here; omitted to keep the exact Net.forward semantics of the module.


def _full_spec(shape):
    return pl.BlockSpec(shape, lambda: tuple(0 for _ in shape))


# ----------------------------- pallas wrappers -------------------------------

@functools.partial(jax.jit, static_argnums=(2, 3))
def net_forward_padded(x_pad, slab, lay: Layout, n_states: int):
    """Hot-path forward: pre-padded x (B_pad, k1) f32 -> lane-dense (B_pad, L) f32."""
    B_pad = x_pad.shape[0]
    return pl.pallas_call(
        functools.partial(_net_kernel, lay=lay, n_states=n_states),
        out_shape=jax.ShapeDtypeStruct((B_pad, lay.L), jnp.float32),
        grid=(),
        in_specs=[_full_spec(x_pad.shape), _full_spec((lay.rows, lay.L))],
        out_specs=_full_spec((B_pad, lay.L)),
    )(x_pad, slab)


@functools.partial(jax.jit, static_argnums=(4, 5))
def dqn_dual_forward_padded(s_pad, s2_pad, slab_eval, slab_target,
                            lay: Layout, n_states: int):
    """One pallas_call = eval_net(s) and target_net(s'). Returns two (B_pad, L) slabs."""
    B_pad = s_pad.shape[0]
    out = jax.ShapeDtypeStruct((B_pad, lay.L), jnp.float32)
    return pl.pallas_call(
        functools.partial(_dual_kernel, lay=lay, n_states=n_states),
        out_shape=(out, out),
        grid=(),
        in_specs=[_full_spec(s_pad.shape), _full_spec(s2_pad.shape),
                  _full_spec((lay.rows, lay.L)), _full_spec((lay.rows, lay.L))],
        out_specs=(_full_spec((B_pad, lay.L)), _full_spec((B_pad, lay.L))),
    )(s_pad, s2_pad, slab_eval, slab_target)


def net_forward(x, slab, lay: Layout, n_states: int, n_actions: int):
    """Convenience wrapper matching Net.forward: (B, n_states) -> (B, n_actions)."""
    x_pad = pad_states(x, lay)
    out = net_forward_padded(x_pad, slab, lay, n_states)
    return out[:x.shape[0], :n_actions]


# ----------------------------- params ----------------------------------------

def init_params(key, n_states, n_actions, n_hidden):
    """PyTorch nn.Linear default init: U[-1/sqrt(fan_in), +1/sqrt(fan_in)]."""
    ks = jax.random.split(key, 6)

    def linear(kw, kb, fan_in, fan_out):
        bound = 1.0 / jnp.sqrt(jnp.float32(fan_in))
        w = jax.random.uniform(kw, (fan_in, fan_out), jnp.float32, -bound, bound)
        b = jax.random.uniform(kb, (fan_out,), jnp.float32, -bound, bound)
        return w, b

    w1, b1 = linear(ks[0], ks[1], n_states, n_hidden)
    w2, b2 = linear(ks[2], ks[3], n_hidden, n_hidden)
    w3, b3 = linear(ks[4], ks[5], n_hidden, n_actions)
    return {"w1": w1, "b1": b1, "w2": w2, "b2": b2, "w3": w3, "b3": b3}


if __name__ == "__main__":
    # CartPole-v0: n_states=4, n_actions=2, hidden=50
    n_states, n_actions, n_hidden = 4, 2, 50

    key = jax.random.PRNGKey(0)
    k_eval, k_tgt, k_s, k_s2, k_small = jax.random.split(key, 5)

    params_eval = init_params(k_eval, n_states, n_actions, n_hidden)
    params_target = init_params(k_tgt, n_states, n_actions, n_hidden)

    lay = make_layout(n_states, n_hidden, n_actions)
    slab_eval = pack_params(params_eval, lay)       # ~48 KB bf16 slab per net
    slab_target = pack_params(params_target, lay)

    # ---- DQN learn-step hot path: B=32 replay batch, one fused pallas_call.
    B = 32
    s = jax.random.normal(k_s, (B, n_states), dtype=jnp.float32)
    s2 = jax.random.normal(k_s2, (B, n_states), dtype=jnp.float32)
    s_pad, s2_pad = pad_states(s, lay), pad_states(s2, lay)   # done once, off hot path

    q_eval_slab, q_next_slab = jax.block_until_ready(
        dqn_dual_forward_padded(s_pad, s2_pad, slab_eval, slab_target, lay, n_states))
    q_eval = q_eval_slab[:B, :n_actions]
    q_next = q_next_slab[:B, :n_actions]

    # ---- Action-selection path with tiny B=2 (convenience wrapper == Net.forward).
    x_small = jax.random.normal(k_small, (2, n_states), dtype=jnp.float32)
    q_small = jax.block_until_ready(
        net_forward(x_small, slab_eval, lay, n_states, n_actions))

    # Plain-JAX reference with bf16-rounded weights (same storage dtype as the slab).
    def ref_fwd(x, p):
        r = lambda a: a.astype(jnp.bfloat16).astype(jnp.float32)
        h = jnp.maximum(x @ r(p["w1"]) + r(p["b1"])[None, :], 0.0)
        h = jnp.maximum(h @ r(p["w2"]) + r(p["b2"])[None, :], 0.0)
        return h @ r(p["w3"]) + r(p["b3"])[None, :]

    assert q_eval.shape == (B, n_actions)
    assert q_next.shape == (B, n_actions)
    assert q_small.shape == (2, n_actions)
    # bf16 activations between layers -> relaxed tolerance vs. f32 reference.
    assert jnp.allclose(q_eval, ref_fwd(s, params_eval), atol=5e-2, rtol=5e-2)
    assert jnp.allclose(q_next, ref_fwd(s2, params_target), atol=5e-2, rtol=5e-2)
    assert jnp.allclose(q_small, ref_fwd(x_small, params_eval), atol=5e-2, rtol=5e-2)

    # TODO(synk): gym env interaction / replay buffer / optimizer step are
    # host-side and out of scope; only Net.forward (and the fused dual-net
    # forward of the DQN learn step) is implemented as a Pallas kernel.
    print("KERNEL_OK")
</pallas_src>

<mosaic_0001>
module attributes {stable_mosaic.version = 11 : i64} {
  func.func @_dual_kernel(%arg0: memref<32x8xf32, #tpu.memory_space<vmem>>, %arg1: memref<32x8xf32, #tpu.memory_space<vmem>>, %arg2: memref<192x128xbf16, #tpu.memory_space<vmem>>, %arg3: memref<192x128xbf16, #tpu.memory_space<vmem>>, %arg4: memref<32x128xf32, #tpu.memory_space<vmem>>, %arg5: memref<32x128xf32, #tpu.memory_space<vmem>>) attributes {dimension_semantics = [], scalar_prefetch = 0 : i64, scratch_operands = 0 : i64, tpu.core_type = #tpu.core_type<tc>} {
    %c0 = arith.constant 0 : index
    %c0_0 = arith.constant 0 : index
    %0 = vector.load %arg0[%c0, %c0_0] : memref<32x8xf32, #tpu.memory_space<vmem>>, vector<32x8xf32>
    %c0_1 = arith.constant 0 : index
    %c0_2 = arith.constant 0 : index
    %1 = vector.load %arg2[%c0_1, %c0_2] : memref<192x128xbf16, #tpu.memory_space<vmem>>, vector<16x128xbf16>
    %2 = arith.extf %1 : vector<16x128xbf16> to vector<16x128xf32>
    %c16 = arith.constant 16 : index
    %c0_3 = arith.constant 0 : index
    %3 = vector.load %arg2[%c16, %c0_3] : memref<192x128xbf16, #tpu.memory_space<vmem>>, vector<1x128xbf16>
    %4 = arith.extf %3 : vector<1x128xbf16> to vector<1x128xf32>
    %5 = vector.shape_cast %4 : vector<1x128xf32> to vector<1x128xf32>
    %6 = vector.broadcast %5 : vector<1x128xf32> to vector<32x128xf32>
    %7 = vector.extract_strided_slice %0 {offsets = [0, 0], sizes = [32, 1], strides = [1, 1]} : vector<32x8xf32> to vector<32x1xf32>
    %8 = vector.extract_strided_slice %2 {offsets = [0, 0], sizes = [1, 128], strides = [1, 1]} : vector<16x128xf32> to vector<1x128xf32>
    %9 = vector.broadcast %7 : vector<32x1xf32> to vector<32x128xf32>
    %10 = vector.broadcast %8 : vector<1x128xf32> to vector<32x128xf32>
    %11 = arith.mulf %9, %10 : vector<32x128xf32>
    %12 = arith.addf %6, %11 : vector<32x128xf32>
    %13 = vector.extract_strided_slice %0 {offsets = [0, 1], sizes = [32, 1], strides = [1, 1]} : vector<32x8xf32> to vector<32x1xf32>
    %14 = vector.extract_strided_slice %2 {offsets = [1, 0], sizes = [1, 128], strides = [1, 1]} : vector<16x128xf32> to vector<1x128xf32>
    %15 = vector.broadcast %13 : vector<32x1xf32> to vector<32x128xf32>
    %16 = vector.broadcast %14 : vector<1x128xf32> to vector<32x128xf32>
    %17 = arith.mulf %15, %16 : vector<32x128xf32>
    %18 = arith.addf %12, %17 : vector<32x128xf32>
    %19 = vector.extract_strided_slice %0 {offsets = [0, 2], sizes = [32, 1], strides = [1, 1]} : vector<32x8xf32> to vector<32x1xf32>
    %20 = vector.extract_strided_slice %2 {offsets = [2, 0], sizes = [1, 128], strides = [1, 1]} : vector<16x128xf32> to vector<1x128xf32>
    %21 = vector.broadcast %19 : vector<32x1xf32> to vector<32x128xf32>
    %22 = vector.broadcast %20 : vector<1x128xf32> to vector<32x128xf32>
    %23 = arith.mulf %21, %22 : vector<32x128xf32>
    %24 = arith.addf %18, %23 : vector<32x128xf32>
    %25 = vector.extract_strided_slice %0 {offsets = [0, 3], sizes = [32, 1], strides = [1, 1]} : vector<32x8xf32> to vector<32x1xf32>
    %26 = vector.extract_strided_slice %2 {offsets = [3, 0], sizes = [1, 128], strides = [1, 1]} : vector<16x128xf32> to vector<1x128xf32>
    %27 = vector.broadcast %25 : vector<32x1xf32> to vector<32x128xf32>
    %28 = vector.broadcast %26 : vector<1x128xf32> to vector<32x128xf32>
    %29 = arith.mulf %27, %28 : vector<32x128xf32>
    %30 = arith.addf %24, %29 : vector<32x128xf32>
    %cst = arith.constant 0.000000e+00 : f32
    %31 = vector.broadcast %cst : f32 to vector<32x128xf32>
    %32 = arith.maximumf %30, %31 : vector<32x128xf32>
    %c32 = arith.constant 32 : index
    %c0_4 = arith.constant 0 : index
    %33 = vector.load %arg2[%c32, %c0_4] : memref<192x128xbf16, #tpu.memory_space<vmem>>, vector<64x128xbf16>
    %c96 = arith.constant 96 : index
    %c0_5 = arith.constant 0 : index
    %34 = vector.load %arg2[%c96, %c0_5] : memref<192x128xbf16, #tpu.memory_space<vmem>>, vector<1x128xbf16>
    %35 = arith.extf %34 : vector<1x128xbf16> to vector<1x128xf32>
    %36 = vector.extract_strided_slice %32 {offsets = [0, 0], sizes = [32, 64], strides = [1, 1]} : vector<32x128xf32> to vector<32x64xf32>
    %37 = arith.truncf %36 : vector<32x64xf32> to vector<32x64xbf16>
    %cst_6 = arith.constant dense<0.000000e+00> : vector<32x128xf32>
    %38 = tpu.matmul %37, %33, %cst_6 {dimension_numbers = #tpu.dot_dimension_numbers<[1], [0], [0], [1], [0, 0, 1, 1], [], []>} : vector<32x64xbf16>, vector<64x128xbf16>, vector<32x128xf32> -> vector<32x128xf32>
    %39 = vector.broadcast %35 : vector<1x128xf32> to vector<32x128xf32>
    %40 = arith.addf %38, %39 : vector<32x128xf32>
    %cst_7 = arith.constant 0.000000e+00 : f32
    %41 = vector.broadcast %cst_7 : f32 to vector<32x128xf32>
    %42 = arith.maximumf %40, %41 : vector<32x128xf32>
    %c112 = arith.constant 112 : index
    %c0_8 = arith.constant 0 : index
    %43 = vector.load %arg2[%c112, %c0_8] : memref<192x128xbf16, #tpu.memory_space<vmem>>, vector<64x128xbf16>
    %c176 = arith.constant 176 : index
    %c0_9 = arith.constant 0 : index
    %44 = vector.load %arg2[%c176, %c0_9] : memref<192x128xbf16, #tpu.memory_space<vmem>>, vector<1x128xbf16>
    %45 = arith.extf %44 : vector<1x128xbf16> to vector<1x128xf32>
    %46 = vector.extract_strided_slice %42 {offsets = [0, 0], sizes = [32, 64], strides = [1, 1]} : vector<32x128xf32> to vector<32x64xf32>
    %47 = arith.truncf %46 : vector<32x64xf32> to vector<32x64xbf16>
    %cst_10 = arith.constant dense<0.000000e+00> : vector<32x128xf32>
    %48 = tpu.matmul %47, %43, %cst_10 {dimension_numbers = #tpu.dot_dimension_numbers<[1], [0], [0], [1], [0, 0, 1, 1], [], []>} : vector<32x64xbf16>, vector<64x128xbf16>, vector<32x128xf32> -> vector<32x128xf32>
    %49 = vector.broadcast %45 : vector<1x128xf32> to vector<32x128xf32>
    %50 = arith.addf %48, %49 : vector<32x128xf32>
    %c0_11 = arith.constant 0 : index
    %c0_12 = arith.constant 0 : index
    %51 = vector.load %arg4[%c0_11, %c0_12] : memref<32x128xf32, #tpu.memory_space<vmem>>, vector<32x128xf32>
    tpu.vector_store %arg4[%c0_11, %c0_12], %50 {strides = array<i32>} : memref<32x128xf32, #tpu.memory_space<vmem>>, vector<32x128xf32>,
    %c0_13 = arith.constant 0 : index
    %c0_14 = arith.constant 0 : index
    %52 = vector.load %arg1[%c0_13, %c0_14] : memref<32x8xf32, #tpu.memory_space<vmem>>, vector<32x8xf32>
    %c0_15 = arith.constant 0 : index
    %c0_16 = arith.constant 0 : index
    %53 = vector.load %arg3[%c0_15, %c0_16] : memref<192x128xbf16, #tpu.memory_space<vmem>>, vector<16x128xbf16>
    %54 = arith.extf %53 : vector<16x128xbf16> to vector<16x128xf32>
    %c16_17 = arith.constant 16 : index
    %c0_18 = arith.constant 0 : index
    %55 = vector.load %arg3[%c16_17, %c0_18] : memref<192x128xbf16, #tpu.memory_space<vmem>>, vector<1x128xbf16>
    %56 = arith.extf %55 : vector<1x128xbf16> to vector<1x128xf32>
    %57 = vector.shape_cast %56 : vector<1x128xf32> to vector<1x128xf32>
    %58 = vector.broadcast %57 : vector<1x128xf32> to vector<32x128xf32>
    %59 = vector.extract_strided_slice %52 {offsets = [0, 0], sizes = [32, 1], strides = [1, 1]} : vector<32x8xf32> to vector<32x1xf32>
    %60 = vector.extract_strided_slice %54 {offsets = [0, 0], sizes = [1, 128], strides = [1, 1]} : vector<16x128xf32> to vector<1x128xf32>
    %61 = vector.broadcast %59 : vector<32x1xf32> to vector<32x128xf32>
    %62 = vector.broadcast %60 : vector<1x128xf32> to vector<32x128xf32>
    %63 = arith.mulf %61, %62 : vector<32x128xf32>
    %64 = arith.addf %58, %63 : vector<32x128xf32>
    %65 = vector.extract_strided_slice %52 {offsets = [0, 1], sizes = [32, 1], strides = [1, 1]} : vector<32x8xf32> to vector<32x1xf32>
    %66 = vector.extract_strided_slice %54 {offsets = [1, 0], sizes = [1, 128], strides = [1, 1]} : vector<16x128xf32> to vector<1x128xf32>
    %67 = vector.broadcast %65 : vector<32x1xf32> to vector<32x128xf32>
    %68 = vector.broadcast %66 : vector<1x128xf32> to vector<32x128xf32>
    %69 = arith.mulf %67, %68 : vector<32x128xf32>
    %70 = arith.addf %64, %69 : vector<32x128xf32>
    %71 = vector.extract_strided_slice %52 {offsets = [0, 2], sizes = [32, 1], strides = [1, 1]} : vector<32x8xf32> to vector<32x1xf32>
    %72 = vector.extract_strided_slice %54 {offsets = [2, 0], sizes = [1, 128], strides = [1, 1]} : vector<16x128xf32> to vector<1x128xf32>
    %73 = vector.broadcast %71 : vector<32x1xf32> to vector<32x128xf32>
    %74 = vector.broadcast %72 : vector<1x128xf32> to vector<32x128xf32>
    %75 = arith.mulf %73, %74 : vector<32x128xf32>
    %76 = arith.addf %70, %75 : vector<32x128xf32>
    %77 = vector.extract_strided_slice %52 {offsets = [0, 3], sizes = [32, 1], strides = [1, 1]} : vector<32x8xf32> to vector<32x1xf32>
    %78 = vector.extract_strided_slice %54 {offsets = [3, 0], sizes = [1, 128], strides = [1, 1]} : vector<16x128xf32> to vector<1x128xf32>
    %79 = vector.broadcast %77 : vector<32x1xf32> to vector<32x128xf32>
    %80 = vector.broadcast %78 : vector<1x128xf32> to vector<32x128xf32>
    %81 = arith.mulf %79, %80 : vector<32x128xf32>
    %82 = arith.addf %76, %81 : vector<32x128xf32>
    %cst_19 = arith.constant 0.000000e+00 : f32
    %83 = vector.broadcast %cst_19 : f32 to vector<32x128xf32>
    %84 = arith.maximumf %82, %83 : vector<32x128xf32>
    %c32_20 = arith.constant 32 : index
    %c0_21 = arith.constant 0 : index
    %85 = vector.load %arg3[%c32_20, %c0_21] : memref<192x128xbf16, #tpu.memory_space<vmem>>, vector<64x128xbf16>
    %c96_22 = arith.constant 96 : index
    %c0_23 = arith.constant 0 : index
    %86 = vector.load %arg3[%c96_22, %c0_23] : memref<192x128xbf16, #tpu.memory_space<vmem>>, vector<1x128xbf16>
    %87 = arith.extf %86 : vector<1x128xbf16> to vector<1x128xf32>
    %88 = vector.extract_strided_slice %84 {offsets = [0, 0], sizes = [32, 64], strides = [1, 1]} : vector<32x128xf32> to vector<32x64xf32>
    %89 = arith.truncf %88 : vector<32x64xf32> to vector<32x64xbf16>
    %cst_24 = arith.constant dense<0.000000e+00> : vector<32x128xf32>
    %90 = tpu.matmul %89, %85, %cst_24 {dimension_numbers = #tpu.dot_dimension_numbers<[1], [0], [0], [1], [0, 0, 1, 1], [], []>} : vector<32x64xbf16>, vector<64x128xbf16>, vector<32x128xf32> -> vector<32x128xf32>
    %91 = vector.broadcast %87 : vector<1x128xf32> to vector<32x128xf32>
    %92 = arith.addf %90, %91 : vector<32x128xf32>
    %cst_25 = arith.constant 0.000000e+00 : f32
    %93 = vector.broadcast %cst_25 : f32 to vector<32x128xf32>
    %94 = arith.maximumf %92, %93 : vector<32x128xf32>
    %c112_26 = arith.constant 112 : index
    %c0_27 = arith.constant 0 : index
    %95 = vector.load %arg3[%c112_26, %c0_27] : memref<192x128xbf16, #tpu.memory_space<vmem>>, vector<64x128xbf16>
    %c176_28 = arith.constant 176 : index
    %c0_29 = arith.constant 0 : index
    %96 = vector.load %arg3[%c176_28, %c0_29] : memref<192x128xbf16, #tpu.memory_space<vmem>>, vector<1x128xbf16>
    %97 = arith.extf %96 : vector<1x128xbf16> to vector<1x128xf32>
    %98 = vector.extract_strided_slice %94 {offsets = [0, 0], sizes = [32, 64], strides = [1, 1]} : vector<32x128xf32> to vector<32x64xf32>
    %99 = arith.truncf %98 : vector<32x64xf32> to vector<32x64xbf16>
    %cst_30 = arith.constant dense<0.000000e+00> : vector<32x128xf32>
    %100 = tpu.matmul %99, %95, %cst_30 {dimension_numbers = #tpu.dot_dimension_numbers<[1], [0], [0], [1], [0, 0, 1, 1], [], []>} : vector<32x64xbf16>, vector<64x128xbf16>, vector<32x128xf32> -> vector<32x128xf32>
    %101 = vector.broadcast %97 : vector<1x128xf32> to vector<32x128xf32>
    %102 = arith.addf %100, %101 : vector<32x128xf32>
    %c0_31 = arith.constant 0 : index
    %c0_32 = arith.constant 0 : index
    %103 = vector.load %arg5[%c0_31, %c0_32] : memref<32x128xf32, #tpu.memory_space<vmem>>, vector<32x128xf32>
    tpu.vector_store %arg5[%c0_31, %c0_32], %102 {strides = array<i32>} : memref<32x128xf32, #tpu.memory_space<vmem>>, vector<32x128xf32>,
    return
  }
}

</mosaic_0001>

<llo_original>
// kernel: dqn_dual_forward_padded.1
$region0: #{dqn_dual_forward_padded.1}
  #allocation0 [shape = 'u32[]', space=smem, size = 0x4, offset = 0x4, fixed_abs, tag = 'smem constant byte address 0x4 - core index']
  #allocation1 [shape = 'u32[144,128]{1,0:T(1,128)}', space=vmem, size = 0x12000, scoped, tag = 'internal scratch']
  %s0 = inlined_call_operand.vmem [shape: f32[32,8], index: 0, kind: input, shape index: {}]
  %s1 = inlined_call_operand.vmem [shape: f32[32,8], index: 1, kind: input, shape index: {}]
  %s2 = inlined_call_operand.hbm [shape: bf16[192,128], index: 2, kind: input, shape index: {}]
  %s3 = inlined_call_operand.hbm [shape: bf16[192,128], index: 3, kind: input, shape index: {}]
  %s4 = inlined_call_operand.hbm [shape: f32[32,128], index: 4, kind: output, shape index: {0}]
  %s5 = inlined_call_operand.hbm [shape: f32[32,128], index: 5, kind: output, shape index: {1}]
  %6 = xla_tuple %s4, %s5
  %s7 = sld [smem:[#allocation0]]
  $region42: #{dqn_dual_forward_padded.1} parent=0
    _
  %s9 = ssub.s32 1, %s7
  %s10 = scalar_select 0, %s9, %s7
  $region1: #{dqn_dual_forward_padded.1} parent=0
    #allocation2 [shape = 'u8[49152]{0}', space=vmem, size = 0xc000, scoped, tag = 'input window, operand 2, single buffered']
    #allocation3 [shape = 's32[1]{0}', space=sflag, size = 0x4, scoped, tag = 'scoped memory for dqn_dual_forward_padded.1']
    #allocation4 [shape = 's32[1]{0}', space=sflag, size = 0x4, scoped, tag = 'scoped memory for dqn_dual_forward_padded.1']
    #allocation5 [shape = 'u8[49152]{0}', space=vmem, size = 0xc000, scoped, tag = 'input window, operand 3, single buffered']
    #allocation6 [shape = 's32[1]{0}', space=sflag, size = 0x4, scoped, tag = 'scoped memory for dqn_dual_forward_padded.1']
    #allocation7 [shape = 'u8[16384]{0}', space=vmem, size = 0x4000, scoped, tag = 'output window, operand 0, single buffered']
    #allocation8 [shape = 'u8[16384]{0}', space=vmem, size = 0x4000, scoped, tag = 'output window, operand 1, single buffered']
    #allocation9 [shape = 's32[1]{0}', space=sflag, size = 0x4, scoped, tag = 'scoped memory for dqn_dual_forward_padded.1']
    %11 = vsyncpa [#allocation3], 0
    %12 = vsyncpa [#allocation6], 0
    %13 = vsyncpa [#allocation4], 0
    %14 = vsyncpa [#allocation9], 0
    // Predicated region
    $region2: #{dqn_dual_forward_padded.1} parent=1 // pred_check
      _
    $region3: #{dqn_dual_forward_padded.1} parent=1 // pred_check_branch
      %16 = sbr.rel (0) target = $region5
    $region4: #{dqn_dual_forward_padded.1} parent=1 // pred_region
      _
    $region5: #{dqn_dual_forward_padded.1} parent=1 // pred_fallthru
      _
    // Predicated region
    $region6: #{dqn_dual_forward_padded.1} parent=1 // pred_check
      _
    $region7: #{dqn_dual_forward_padded.1} parent=1 // pred_check_branch
      %18 = sbr.rel (0) target = $region9
    $region8: #{dqn_dual_forward_padded.1} parent=1 // pred_region
      _
    $region9: #{dqn_dual_forward_padded.1} parent=1 // pred_fallthru
      _
    // Predicated region
    $region10: #{dqn_dual_forward_padded.1} parent=1 // pred_check
      _
    $region11: #{dqn_dual_forward_padded.1} parent=1 // pred_check_branch
      %20 = sbr.rel (0) target = $region13
    $region12: #{dqn_dual_forward_padded.1} parent=1 // pred_region
      %s22 = ssub.s32 1536, 1536
      %23 = vsyncadd [#allocation3], %s22
      %s24 = sshll.u32 [#allocation2], 4
      %s25 = int_to_ptr.vmem [resolvable:$true] %s24
      %30 = dma.hbm_to_vmem [thread:$0]  %s2, 1536, %s25, [#allocation3], 64, 64, 4
    $region13: #{dqn_dual_forward_padded.1} parent=1 // pred_fallthru
      _
    // Predicated region
    $region14: #{dqn_dual_forward_padded.1} parent=1 // pred_check
      _
    $region15: #{dqn_dual_forward_padded.1} parent=1 // pred_check_branch
      %32 = sbr.rel (0) target = $region17
    $region16: #{dqn_dual_forward_padded.1} parent=1 // pred_region
      %s34 = ssub.s32 1536, 1536
      %35 = vsyncadd [#allocation6], %s34
      %s36 = sshll.u32 [#allocation5], 4
      %s37 = int_to_ptr.vmem [resolvable:$true] %s36
      %42 = dma.hbm_to_vmem [thread:$0]  %s3, 1536, %s37, [#allocation6], 64, 64, 4
    $region17: #{dqn_dual_forward_padded.1} parent=1 // pred_fallthru
      _
    // Predicated region
    $region18: #{dqn_dual_forward_padded.1} parent=1 // pred_check
      _
    $region19: #{dqn_dual_forward_padded.1} parent=1 // pred_check_branch
      %44 = sbr.rel (0) target = $region21
    $region20: #{dqn_dual_forward_padded.1} parent=1 // pred_region
      %45 = dma.done [#allocation3], 1536
    $region21: #{dqn_dual_forward_padded.1} parent=1 // pred_fallthru
      _
    // Predicated region
    $region22: #{dqn_dual_forward_padded.1} parent=1 // pred_check
      _
    $region23: #{dqn_dual_forward_padded.1} parent=1 // pred_check_branch
      %47 = sbr.rel (0) target = $region25
    $region24: #{dqn_dual_forward_padded.1} parent=1 // pred_region
      %48 = dma.done [#allocation6], 1536
    $region25: #{dqn_dual_forward_padded.1} parent=1 // pred_fallthru
      _
    %v50 = vld [vmem:[%s0] sm:$0xff]
    %v51 = vld [vmem:[%s0 + $0x8] sm:$0xff]
    %v52 = vld [vmem:[%s0 + $0x10] sm:$0xff]
    %v53 = vld [vmem:[%s0 + $0x18] sm:$0xff]
    %v54 = vld [vmem:[#allocation2] sm:$0xf]
    %v55 = vunpack.c.l.bf16 %v54
    %v56 = vld [vmem:[#allocation2 + $0x8] sm:$0x1]
    %v57 = vunpack.c.l.bf16 %v56
    %v58 = vlaneseq
    %v59 = vshrl.u32 %v58, 7
    %v60 = vsub.s32 0, %v59
    %v61 = vrot.slane %v57, %v60
    %63 = vset.pattern.permute.xlu0 0
    %64 = vperm.xlu0 %63, %v50
    %v65 = vpop.permute.xlu0 %64
    %68 = vset.pattern.permute.xlu0 0
    %69 = vperm.xlu0 %68, %v51
    %v70 = vpop.permute.xlu0 %69
    %73 = vset.pattern.permute.xlu0 0
    %74 = vperm.xlu0 %73, %v52
    %v75 = vpop.permute.xlu0 %74
    %78 = vset.pattern.permute.xlu0 0
    %79 = vperm.xlu0 %78, %v53
    %v80 = vpop.permute.xlu0 %79
    %v82 = vlaneseq
    %v83 = vshrl.u32 %v82, 7
    %v84 = vsub.s32 0, %v83
    %v85 = vrot.slane %v55, %v84
    %v86 = vmul.f32 %v65, %v85
    %v87 = vmul.f32 %v70, %v85
    %v88 = vmul.f32 %v75, %v85
    %v89 = vmul.f32 %v80, %v85
    %v90 = vadd.f32 %v61, %v86
    %v91 = vadd.f32 %v61, %v87
    %v92 = vadd.f32 %v61, %v88
    %v93 = vadd.f32 %v61, %v89
    %94 = vset.pattern.permute.xlu0 1
    %95 = vperm.xlu0 %94, %v50
    %v96 = vpop.permute.xlu0 %95
    %98 = vset.pattern.permute.xlu0 1
    %99 = vperm.xlu0 %98, %v51
    %v100 = vpop.permute.xlu0 %99
    %102 = vset.pattern.permute.xlu0 1
    %103 = vperm.xlu0 %102, %v52
    %v104 = vpop.permute.xlu0 %103
    %106 = vset.pattern.permute.xlu0 1
    %107 = vperm.xlu0 %106, %v53
    %v108 = vpop.permute.xlu0 %107
    %v110 = vlaneseq
    %v111 = vshrl.u32 %v110, 7
    %v112 = vsub.s32 1, %v111
    %v113 = vrot.slane %v55, %v112
    %v114 = vmul.f32 %v96, %v113
    %v115 = vmul.f32 %v100, %v113
    %v116 = vmul.f32 %v104, %v113
    %v117 = vmul.f32 %v108, %v113
    %v118 = vadd.f32 %v90, %v114
    %v119 = vadd.f32 %v91, %v115
    %v120 = vadd.f32 %v92, %v116
    %v121 = vadd.f32 %v93, %v117
    %122 = vset.pattern.permute.xlu0 2
    %123 = vperm.xlu0 %122, %v50
    %v124 = vpop.permute.xlu0 %123
    %126 = vset.pattern.permute.xlu0 2
    %127 = vperm.xlu0 %126, %v51
    %v128 = vpop.permute.xlu0 %127
    %130 = vset.pattern.permute.xlu0 2
    %131 = vperm.xlu0 %130, %v52
    %v132 = vpop.permute.xlu0 %131
    %134 = vset.pattern.permute.xlu0 2
    %135 = vperm.xlu0 %134, %v53
    %v136 = vpop.permute.xlu0 %135
    %v138 = vlaneseq
    %v139 = vshrl.u32 %v138, 7
    %v140 = vsub.s32 2, %v139
    %v141 = vrot.slane %v55, %v140
    %v142 = vmul.f32 %v124, %v141
    %v143 = vmul.f32 %v128, %v141
    %v144 = vmul.f32 %v132, %v141
    %v145 = vmul.f32 %v136, %v141
    %v146 = vadd.f32 %v118, %v142
    %v147 = vadd.f32 %v119, %v143
    %v148 = vadd.f32 %v120, %v144
    %v149 = vadd.f32 %v121, %v145
    %150 = vset.pattern.permute.xlu0 3
    %151 = vperm.xlu0 %150, %v50
    %v152 = vpop.permute.xlu0 %151
    %154 = vset.pattern.permute.xlu0 3
    %155 = vperm.xlu0 %154, %v51
    %v156 = vpop.permute.xlu0 %155
    %158 = vset.pattern.permute.xlu0 3
    %159 = vperm.xlu0 %158, %v52
    %v160 = vpop.permute.xlu0 %159
    %162 = vset.pattern.permute.xlu0 3
    %163 = vperm.xlu0 %162, %v53
    %v164 = vpop.permute.xlu0 %163
    %v166 = vlaneseq
    %v167 = vshrl.u32 %v166, 7
    %v168 = vsub.s32 3, %v167
    %v169 = vrot.slane %v55, %v168
    %v170 = vmul.f32 %v152, %v169
    %v171 = vmul.f32 %v156, %v169
    %v172 = vmul.f32 %v160, %v169
    %v173 = vmul.f32 %v164, %v169
    %v174 = vadd.f32 %v146, %v170
    %v175 = vadd.f32 %v147, %v171
    %v176 = vadd.f32 %v148, %v172
    %v177 = vadd.f32 %v149, %v173
    %v178 = vmax.f32 %v174, 0.0
    %v179 = vmax.f32 %v175, 0.0
    %v180 = vmax.f32 %v176, 0.0
    %v181 = vmax.f32 %v177, 0.0
    %v182 = vld [vmem:[#allocation2 + $0x10] sm:$0xf]
    %v183 = vld [vmem:[#allocation2 + $0x14] sm:$0xf]
    %v184 = vld [vmem:[#allocation2 + $0x18] sm:$0xf]
    %v185 = vld [vmem:[#allocation2 + $0x1c] sm:$0xf]
    %v186 = vld [vmem:[#allocation2 + $0x20] sm:$0xf]
    %v187 = vld [vmem:[#allocation2 + $0x24] sm:$0xf]
    %v188 = vld [vmem:[#allocation2 + $0x28] sm:$0xf]
    %v189 = vld [vmem:[#allocation2 + $0x2c] sm:$0xf]
    %v190 = vld [vmem:[#allocation2 + $0x30] sm:$0x1]
    %v191 = vunpack.c.l.bf16 %v190
    %v192 = vpack.c.bf16 %v179, %v178
    %v193 = vpack.c.bf16 %v181, %v180
    %v194 = vlaneseq
    %v195 = vshrl.u32 %v194, 7
    %v196 = vsub.s32 0, %v195
    %v197 = vrot.slane %v191, %v196
    %v206 = vunpack.c.l.b16 %v182
    %v207 = vunpack.c.l.b16 %v183
    %v208 = vunpack.c.l.b16 %v184
    %v209 = vunpack.c.l.b16 %v185
    %v210 = vunpack.c.l.b16 %v186
    %v211 = vunpack.c.l.b16 %v187
    %v212 = vunpack.c.l.b16 %v188
    %v213 = vunpack.c.l.b16 %v189
    %v214 = vpack.c.b16 %v207, %v206
    %v215 = vpack.c.b16 %v209, %v208
    %v216 = vpack.c.b16 %v211, %v210
    %v217 = vpack.c.b16 %v213, %v212
    %vm222 = vcmask 523264
    %v224 = vsel %vm222, %v192, 0
    %v227 = vsel %vm222, %v193, 0
    %229 = vmatprep.subr.bf16.mxu0 0
    %230 = vmatpush1.bf16.msra.mxu0 %v214
    %231 = vmatprep.subr.bf16.mxu0 0
    %232 = vmatpush1.bf16.msra.mxu0 %v215
    %233 = vmatprep.subr.bf16.mxu0 0
    %234 = vmatpush1.bf16.msra.mxu0 %v216
    %235 = vmatprep.subr.bf16.mxu0 0
    %236 = vmatpush1.bf16.msra.mxu0 %v217
    %237 = vmatprep.subr.bf16.mxu0 0
    %238 = vmatpush1.bf16.msra.mxu0 0
    %239 = vmatprep.subr.bf16.mxu0 0
    %240 = vmatpush1.bf16.msra.mxu0 0
    %241 = vmatprep.subr.bf16.mxu0 0
    %242 = vmatpush1.bf16.msra.mxu0 0
    %243 = vmatprep.subr.bf16.mxu0 0
    %244 = vmatpush1.bf16.msra.mxu0 0
    %245 = vmatprep.subr.bf16.mxu0 0
    %246 = vmatpush1.bf16.msra.mxu0 0
    %247 = vmatprep.subr.bf16.mxu0 0
    %248 = vmatpush1.bf16.msra.mxu0 0
    %249 = vmatprep.subr.bf16.mxu0 0
    %250 = vmatpush1.bf16.msra.mxu0 0
    %251 = vmatprep.subr.bf16.mxu0 0
    %252 = vmatpush1.bf16.msra.mxu0 0
    %253 = vmatprep.subr.bf16.mxu0 0
    %254 = vmatpush1.bf16.msra.mxu0 0
    %255 = vmatprep.subr.bf16.mxu0 0
    %256 = vmatpush1.bf16.msra.mxu0 0
    %257 = vmatprep.subr.bf16.mxu0 0
    %258 = vmatpush1.bf16.msra.mxu0 0
    %259 = vmatprep.subr.bf16.mxu0 0
    %260 = vmatpush1.bf16.msra.mxu0 0
    %261 = vmatprep.mubr.bf16.mxu0 0
    %262 = vmatmul.mubr.bf16.gmra.mrb[0].mxu0 %v224
    %v263 = vpop.f32.mrb[0].mxu0
    %v264 = vadd.f32 %v197, %v263
    %v265 = vpop.f32.mrb[0].mxu0
    %v266 = vpop.f32.mrb[0].mxu0
    %v267 = vadd.f32 %v197, %v266
    %v268 = vpop.f32.mrb[0].mxu0
    %269 = vmatprep.mubr.bf16.mxu0 0
    %270 = vmatmul.mubr.bf16.gmra.mrb[0].mxu0 %v227
    %v271 = vpop.f32.mrb[0].mxu0
    %v272 = vadd.f32 %v197, %v271
    %v273 = vpop.f32.mrb[0].mxu0
    %v274 = vpop.f32.mrb[0].mxu0
    %v275 = vadd.f32 %v197, %v274
    %v276 = vpop.f32.mrb[0].mxu0
    %277 = vdwg.mxu0
    %v278 = vmax.f32 %v264, 0.0
    %v279 = vmax.f32 %v267, 0.0
    %v280 = vmax.f32 %v272, 0.0
    %v281 = vmax.f32 %v275, 0.0
    %v282 = vld [vmem:[#allocation2 + $0x38] sm:$0xf]
    %v283 = vld [vmem:[#allocation2 + $0x3c] sm:$0xf]
    %v284 = vld [vmem:[#allocation2 + $0x40] sm:$0xf]
    %v285 = vld [vmem:[#allocation2 + $0x44] sm:$0xf]
    %v286 = vld [vmem:[#allocation2 + $0x48] sm:$0xf]
    %v287 = vld [vmem:[#allocation2 + $0x4c] sm:$0xf]
    %v288 = vld [vmem:[#allocation2 + $0x50] sm:$0xf]
    %v289 = vld [vmem:[#allocation2 + $0x54] sm:$0xf]
    %v290 = vld [vmem:[#allocation2 + $0x58] sm:$0x1]
    %v291 = vunpack.c.l.bf16 %v290
    %v292 = vpack.c.bf16 %v279, %v278
    %v293 = vpack.c.bf16 %v281, %v280
    %v294 = vlaneseq
    %v295 = vshrl.u32 %v294, 7
    %v296 = vsub.s32 0, %v295
    %v297 = vrot.slane %v291, %v296
    %v306 = vunpack.c.l.b16 %v282
    %v307 = vunpack.c.l.b16 %v283
    %v308 = vunpack.c.l.b16 %v284
    %v309 = vunpack.c.l.b16 %v285
    %v310 = vunpack.c.l.b16 %v286
    %v311 = vunpack.c.l.b16 %v287
    %v312 = vunpack.c.l.b16 %v288
    %v313 = vunpack.c.l.b16 %v289
    %v314 = vpack.c.b16 %v307, %v306
    %v315 = vpack.c.b16 %v309, %v308
    %v316 = vpack.c.b16 %v311, %v310
    %v317 = vpack.c.b16 %v313, %v312
    %v323 = vsel %vm222, %v292, 0
    %v326 = vsel %vm222, %v293, 0
    %328 = vmatprep.subr.bf16.mxu0 0
    %329 = vmatpush1.bf16.msra.mxu0 %v314
    %330 = vmatprep.subr.bf16.mxu0 0
    %331 = vmatpush1.bf16.msra.mxu0 %v315
    %332 = vmatprep.subr.bf16.mxu0 0
    %333 = vmatpush1.bf16.msra.mxu0 %v316
    %334 = vmatprep.subr.bf16.mxu0 0
    %335 = vmatpush1.bf16.msra.mxu0 %v317
    %336 = vmatprep.subr.bf16.mxu0 0
    %337 = vmatpush1.bf16.msra.mxu0 0
    %338 = vmatprep.subr.bf16.mxu0 0
    %339 = vmatpush1.bf16.msra.mxu0 0
    %340 = vmatprep.subr.bf16.mxu0 0
    %341 = vmatpush1.bf16.msra.mxu0 0
    %342 = vmatprep.subr.bf16.mxu0 0
    %343 = vmatpush1.bf16.msra.mxu0 0
    %344 = vmatprep.subr.bf16.mxu0 0
    %345 = vmatpush1.bf16.msra.mxu0 0
    %346 = vmatprep.subr.bf16.mxu0 0
    %347 = vmatpush1.bf16.msra.mxu0 0
    %348 = vmatprep.subr.bf16.mxu0 0
    %349 = vmatpush1.bf16.msra.mxu0 0
    %350 = vmatprep.subr.bf16.mxu0 0
    %351 = vmatpush1.bf16.msra.mxu0 0
    %352 = vmatprep.subr.bf16.mxu0 0
    %353 = vmatpush1.bf16.msra.mxu0 0
    %354 = vmatprep.subr.bf16.mxu0 0
    %355 = vmatpush1.bf16.msra.mxu0 0
    %356 = vmatprep.subr.bf16.mxu0 0
    %357 = vmatpush1.bf16.msra.mxu0 0
    %358 = vmatprep.subr.bf16.mxu0 0
    %359 = vmatpush1.bf16.msra.mxu0 0
    %360 = vmatprep.mubr.bf16.mxu0 0
    %361 = vmatmul.mubr.bf16.gmra.mrb[0].mxu0 %v323
    %v362 = vpop.f32.mrb[0].mxu0
    %v363 = vadd.f32 %v297, %v362
    %v364 = vpop.f32.mrb[0].mxu0
    %v365 = vpop.f32.mrb[0].mxu0
    %v366 = vadd.f32 %v297, %v365
    %v367 = vpop.f32.mrb[0].mxu0
    %368 = vmatprep.mubr.bf16.mxu0 0
    %369 = vmatmul.mubr.bf16.gmra.mrb[0].mxu0 %v326
    %v370 = vpop.f32.mrb[0].mxu0
    %v371 = vadd.f32 %v297, %v370
    %v372 = vpop.f32.mrb[0].mxu0
    %v373 = vpop.f32.mrb[0].mxu0
    %v374 = vadd.f32 %v297, %v373
    %v375 = vpop.f32.mrb[0].mxu0
    %376 = vdwg.mxu0
    %377 = vst [vmem:[#allocation7] sm:$0xff] %v363
    %378 = vst [vmem:[#allocation7 + $0x8] sm:$0xff] %v366
    %379 = vst [vmem:[#allocation7 + $0x10] sm:$0xff] %v371
    %380 = vst [vmem:[#allocation7 + $0x18] sm:$0xff] %v374
    %v381 = vld [vmem:[%s1] sm:$0xff]
    %v382 = vld [vmem:[%s1 + $0x8] sm:$0xff]
    %v383 = vld [vmem:[%s1 + $0x10] sm:$0xff]
    %v384 = vld [vmem:[%s1 + $0x18] sm:$0xff]
    %v385 = vld [vmem:[#allocation5] sm:$0xf]
    %v386 = vunpack.c.l.bf16 %v385
    %v387 = vld [vmem:[#allocation5 + $0x8] sm:$0x1]
    %v388 = vunpack.c.l.bf16 %v387
    %v389 = vlaneseq
    %v390 = vshrl.u32 %v389, 7
    %v391 = vsub.s32 0, %v390
    %v392 = vrot.slane %v388, %v391
    %394 = vset.pattern.permute.xlu0 0
    %395 = vperm.xlu0 %394, %v381
    %v396 = vpop.permute.xlu0 %395
    %399 = vset.pattern.permute.xlu0 0
    %400 = vperm.xlu0 %399, %v382
    %v401 = vpop.permute.xlu0 %400
    %404 = vset.pattern.permute.xlu0 0
    %405 = vperm.xlu0 %404, %v383
    %v406 = vpop.permute.xlu0 %405
    %409 = vset.pattern.permute.xlu0 0
    %410 = vperm.xlu0 %409, %v384
    %v411 = vpop.permute.xlu0 %410
    %v413 = vlaneseq
    %v414 = vshrl.u32 %v413, 7
    %v415 = vsub.s32 0, %v414
    %v416 = vrot.slane %v386, %v415
    %v417 = vmul.f32 %v396, %v416
    %v418 = vmul.f32 %v401, %v416
    %v419 = vmul.f32 %v406, %v416
    %v420 = vmul.f32 %v411, %v416
    %v421 = vadd.f32 %v392, %v417
    %v422 = vadd.f32 %v392, %v418
    %v423 = vadd.f32 %v392, %v419
    %v424 = vadd.f32 %v392, %v420
    %425 = vset.pattern.permute.xlu0 1
    %426 = vperm.xlu0 %425, %v381
    %v427 = vpop.permute.xlu0 %426
    %429 = vset.pattern.permute.xlu0 1
    %430 = vperm.xlu0 %429, %v382
    %v431 = vpop.permute.xlu0 %430
    %433 = vset.pattern.permute.xlu0 1
    %434 = vperm.xlu0 %433, %v383
    %v435 = vpop.permute.xlu0 %434
    %437 = vset.pattern.permute.xlu0 1
    %438 = vperm.xlu0 %437, %v384
    %v439 = vpop.permute.xlu0 %438
    %v441 = vlaneseq
    %v442 = vshrl.u32 %v441, 7
    %v443 = vsub.s32 1, %v442
    %v444 = vrot.slane %v386, %v443
    %v445 = vmul.f32 %v427, %v444
    %v446 = vmul.f32 %v431, %v444
    %v447 = vmul.f32 %v435, %v444
    %v448 = vmul.f32 %v439, %v444
    %v449 = vadd.f32 %v421, %v445
    %v450 = vadd.f32 %v422, %v446
    %v451 = vadd.f32 %v423, %v447
    %v452 = vadd.f32 %v424, %v448
    %453 = vset.pattern.permute.xlu0 2
    %454 = vperm.xlu0 %453, %v381
    %v455 = vpop.permute.xlu0 %454
    %457 = vset.pattern.permute.xlu0 2
    %458 = vperm.xlu0 %457, %v382
    %v459 = vpop.permute.xlu0 %458
    %461 = vset.pattern.permute.xlu0 2
    %462 = vperm.xlu0 %461, %v383
    %v463 = vpop.permute.xlu0 %462
    %465 = vset.pattern.permute.xlu0 2
    %466 = vperm.xlu0 %465, %v384
    %v467 = vpop.permute.xlu0 %466
    %v469 = vlaneseq
    %v470 = vshrl.u32 %v469, 7
    %v471 = vsub.s32 2, %v470
    %v472 = vrot.slane %v386, %v471
    %v473 = vmul.f32 %v455, %v472
    %v474 = vmul.f32 %v459, %v472
    %v475 = vmul.f32 %v463, %v472
    %v476 = vmul.f32 %v467, %v472
    %v477 = vadd.f32 %v449, %v473
    %v478 = vadd.f32 %v450, %v474
    %v479 = vadd.f32 %v451, %v475
    %v480 = vadd.f32 %v452, %v476
    %481 = vset.pattern.permute.xlu0 3
    %482 = vperm.xlu0 %481, %v381
    %v483 = vpop.permute.xlu0 %482
    %485 = vset.pattern.permute.xlu0 3
    %486 = vperm.xlu0 %485, %v382
    %v487 = vpop.permute.xlu0 %486
    %489 = vset.pattern.permute.xlu0 3
    %490 = vperm.xlu0 %489, %v383
    %v491 = vpop.permute.xlu0 %490
    %493 = vset.pattern.permute.xlu0 3
    %494 = vperm.xlu0 %493, %v384
    %v495 = vpop.permute.xlu0 %494
    %v497 = vlaneseq
    %v498 = vshrl.u32 %v497, 7
    %v499 = vsub.s32 3, %v498
    %v500 = vrot.slane %v386, %v499
    %v501 = vmul.f32 %v483, %v500
    %v502 = vmul.f32 %v487, %v500
    %v503 = vmul.f32 %v491, %v500
    %v504 = vmul.f32 %v495, %v500
    %v505 = vadd.f32 %v477, %v501
    %v506 = vadd.f32 %v478, %v502
    %v507 = vadd.f32 %v479, %v503
    %v508 = vadd.f32 %v480, %v504
    %v509 = vmax.f32 %v505, 0.0
    %v510 = vmax.f32 %v506, 0.0
    %v511 = vmax.f32 %v507, 0.0
    %v512 = vmax.f32 %v508, 0.0
    %v513 = vld [vmem:[#allocation5 + $0x10] sm:$0xf]
    %v514 = vld [vmem:[#allocation5 + $0x14] sm:$0xf]
    %v515 = vld [vmem:[#allocation5 + $0x18] sm:$0xf]
    %v516 = vld [vmem:[#allocation5 + $0x1c] sm:$0xf]
    %v517 = vld [vmem:[#allocation5 + $0x20] sm:$0xf]
    %v518 = vld [vmem:[#allocation5 + $0x24] sm:$0xf]
    %v519 = vld [vmem:[#allocation5 + $0x28] sm:$0xf]
    %v520 = vld [vmem:[#allocation5 + $0x2c] sm:$0xf]
    %v521 = vld [vmem:[#allocation5 + $0x30] sm:$0x1]
    %v522 = vunpack.c.l.bf16 %v521
    %v523 = vpack.c.bf16 %v510, %v509
    %v524 = vpack.c.bf16 %v512, %v511
    %v525 = vlaneseq
    %v526 = vshrl.u32 %v525, 7
    %v527 = vsub.s32 0, %v526
    %v528 = vrot.slane %v522, %v527
    %v537 = vunpack.c.l.b16 %v513
    %v538 = vunpack.c.l.b16 %v514
    %v539 = vunpack.c.l.b16 %v515
    %v540 = vunpack.c.l.b16 %v516
    %v541 = vunpack.c.l.b16 %v517
    %v542 = vunpack.c.l.b16 %v518
    %v543 = vunpack.c.l.b16 %v519
    %v544 = vunpack.c.l.b16 %v520
    %v545 = vpack.c.b16 %v538, %v537
    %v546 = vpack.c.b16 %v540, %v539
    %v547 = vpack.c.b16 %v542, %v541
    %v548 = vpack.c.b16 %v544, %v543
    %v554 = vsel %vm222, %v523, 0
    %v557 = vsel %vm222, %v524, 0
    %559 = vmatprep.subr.bf16.mxu0 0
    %560 = vmatpush1.bf16.msra.mxu0 %v545
    %561 = vmatprep.subr.bf16.mxu0 0
    %562 = vmatpush1.bf16.msra.mxu0 %v546
    %563 = vmatprep.subr.bf16.mxu0 0
    %564 = vmatpush1.bf16.msra.mxu0 %v547
    %565 = vmatprep.subr.bf16.mxu0 0
    %566 = vmatpush1.bf16.msra.mxu0 %v548
    %567 = vmatprep.subr.bf16.mxu0 0
    %568 = vmatpush1.bf16.msra.mxu0 0
    %569 = vmatprep.subr.bf16.mxu0 0
    %570 = vmatpush1.bf16.msra.mxu0 0
    %571 = vmatprep.subr.bf16.mxu0 0
    %572 = vmatpush1.bf16.msra.mxu0 0
    %573 = vmatprep.subr.bf16.mxu0 0
    %574 = vmatpush1.bf16.msra.mxu0 0
    %575 = vmatprep.subr.bf16.mxu0 0
    %576 = vmatpush1.bf16.msra.mxu0 0
    %577 = vmatprep.subr.bf16.mxu0 0
    %578 = vmatpush1.bf16.msra.mxu0 0
    %579 = vmatprep.subr.bf16.mxu0 0
    %580 = vmatpush1.bf16.msra.mxu0 0
    %581 = vmatprep.subr.bf16.mxu0 0
    %582 = vmatpush1.bf16.msra.mxu0 0
    %583 = vmatprep.subr.bf16.mxu0 0
    %584 = vmatpush1.bf16.msra.mxu0 0
    %585 = vmatprep.subr.bf16.mxu0 0
    %586 = vmatpush1.bf16.msra.mxu0 0
    %587 = vmatprep.subr.bf16.mxu0 0
    %588 = vmatpush1.bf16.msra.mxu0 0
    %589 = vmatprep.subr.bf16.mxu0 0
    %590 = vmatpush1.bf16.msra.mxu0 0
    %591 = vmatprep.mubr.bf16.mxu0 0
    %592 = vmatmul.mubr.bf16.gmra.mrb[0].mxu0 %v554
    %v593 = vpop.f32.mrb[0].mxu0
    %v594 = vadd.f32 %v528, %v593
    %v595 = vpop.f32.mrb[0].mxu0
    %v596 = vpop.f32.mrb[0].mxu0
    %v597 = vadd.f32 %v528, %v596
    %v598 = vpop.f32.mrb[0].mxu0
    %599 = vmatprep.mubr.bf16.mxu0 0
    %600 = vmatmul.mubr.bf16.gmra.mrb[0].mxu0 %v557
    %v601 = vpop.f32.mrb[0].mxu0
    %v602 = vadd.f32 %v528, %v601
    %v603 = vpop.f32.mrb[0].mxu0
    %v604 = vpop.f32.mrb[0].mxu0
    %v605 = vadd.f32 %v528, %v604
    %v606 = vpop.f32.mrb[0].mxu0
    %607 = vdwg.mxu0
    %v608 = vmax.f32 %v594, 0.0
    %v609 = vmax.f32 %v597, 0.0
    %v610 = vmax.f32 %v602, 0.0
    %v611 = vmax.f32 %v605, 0.0
    %v612 = vld [vmem:[#allocation5 + $0x38] sm:$0xf]
    %v613 = vld [vmem:[#allocation5 + $0x3c] sm:$0xf]
    %v614 = vld [vmem:[#allocation5 + $0x40] sm:$0xf]
    %v615 = vld [vmem:[#allocation5 + $0x44] sm:$0xf]
    %v616 = vld [vmem:[#allocation5 + $0x48] sm:$0xf]
    %v617 = vld [vmem:[#allocation5 + $0x4c] sm:$0xf]
    %v618 = vld [vmem:[#allocation5 + $0x50] sm:$0xf]
    %v619 = vld [vmem:[#allocation5 + $0x54] sm:$0xf]
    %v620 = vld [vmem:[#allocation5 + $0x58] sm:$0x1]
    %v621 = vunpack.c.l.bf16 %v620
    %v622 = vpack.c.bf16 %v609, %v608
    %v623 = vpack.c.bf16 %v611, %v610
    %v624 = vlaneseq
    %v625 = vshrl.u32 %v624, 7
    %v626 = vsub.s32 0, %v625
    %v627 = vrot.slane %v621, %v626
    %v636 = vunpack.c.l.b16 %v612
    %v637 = vunpack.c.l.b16 %v613
    %v638 = vunpack.c.l.b16 %v614
    %v639 = vunpack.c.l.b16 %v615
    %v640 = vunpack.c.l.b16 %v616
    %v641 = vunpack.c.l.b16 %v617
    %v642 = vunpack.c.l.b16 %v618
    %v643 = vunpack.c.l.b16 %v619
    %v644 = vpack.c.b16 %v637, %v636
    %v645 = vpack.c.b16 %v639, %v638
    %v646 = vpack.c.b16 %v641, %v640
    %v647 = vpack.c.b16 %v643, %v642
    %v653 = vsel %vm222, %v622, 0
    %v656 = vsel %vm222, %v623, 0
    %658 = vmatprep.subr.bf16.mxu0 0
    %659 = vmatpush1.bf16.msra.mxu0 %v644
    %660 = vmatprep.subr.bf16.mxu0 0
    %661 = vmatpush1.bf16.msra.mxu0 %v645
    %662 = vmatprep.subr.bf16.mxu0 0
    %663 = vmatpush1.bf16.msra.mxu0 %v646
    %664 = vmatprep.subr.bf16.mxu0 0
    %665 = vmatpush1.bf16.msra.mxu0 %v647
    %666 = vmatprep.subr.bf16.mxu0 0
    %667 = vmatpush1.bf16.msra.mxu0 0
    %668 = vmatprep.subr.bf16.mxu0 0
    %669 = vmatpush1.bf16.msra.mxu0 0
    %670 = vmatprep.subr.bf16.mxu0 0
    %671 = vmatpush1.bf16.msra.mxu0 0
    %672 = vmatprep.subr.bf16.mxu0 0
    %673 = vmatpush1.bf16.msra.mxu0 0
    %674 = vmatprep.subr.bf16.mxu0 0
    %675 = vmatpush1.bf16.msra.mxu0 0
    %676 = vmatprep.subr.bf16.mxu0 0
    %677 = vmatpush1.bf16.msra.mxu0 0
    %678 = vmatprep.subr.bf16.mxu0 0
    %679 = vmatpush1.bf16.msra.mxu0 0
    %680 = vmatprep.subr.bf16.mxu0 0
    %681 = vmatpush1.bf16.msra.mxu0 0
    %682 = vmatprep.subr.bf16.mxu0 0
    %683 = vmatpush1.bf16.msra.mxu0 0
    %684 = vmatprep.subr.bf16.mxu0 0
    %685 = vmatpush1.bf16.msra.mxu0 0
    %686 = vmatprep.subr.bf16.mxu0 0
    %687 = vmatpush1.bf16.msra.mxu0 0
    %688 = vmatprep.subr.bf16.mxu0 0
    %689 = vmatpush1.bf16.msra.mxu0 0
    %690 = vmatprep.mubr.bf16.mxu0 0
    %691 = vmatmul.mubr.bf16.gmra.mrb[0].mxu0 %v653
    %v692 = vpop.f32.mrb[0].mxu0
    %v693 = vadd.f32 %v627, %v692
    %v694 = vpop.f32.mrb[0].mxu0
    %v695 = vpop.f32.mrb[0].mxu0
    %v696 = vadd.f32 %v627, %v695
    %v697 = vpop.f32.mrb[0].mxu0
    %698 = vmatprep.mubr.bf16.mxu0 0
    %699 = vmatmul.mubr.bf16.gmra.mrb[0].mxu0 %v656
    %v700 = vpop.f32.mrb[0].mxu0
    %v701 = vadd.f32 %v627, %v700
    %v702 = vpop.f32.mrb[0].mxu0
    %v703 = vpop.f32.mrb[0].mxu0
    %v704 = vadd.f32 %v627, %v703
    %v705 = vpop.f32.mrb[0].mxu0
    %706 = vdwg.mxu0
    %707 = vst [vmem:[#allocation8] sm:$0xff] %v693
    %708 = vst [vmem:[#allocation8 + $0x8] sm:$0xff] %v696
    %709 = vst [vmem:[#allocation8 + $0x10] sm:$0xff] %v701
    %710 = vst [vmem:[#allocation8 + $0x18] sm:$0xff] %v704
    // Predicated region
    $region26: #{dqn_dual_forward_padded.1} parent=1 // pred_check
      _
    $region27: #{dqn_dual_forward_padded.1} parent=1 // pred_check_branch
      %712 = sbr.rel (0) target = $region29
    $region28: #{dqn_dual_forward_padded.1} parent=1 // pred_region
      %s714 = ssub.s32 512, 512
      %715 = vsyncadd [#allocation4], %s714
      %s716 = sshll.u32 [#allocation7], 4
      %s717 = int_to_ptr.vmem [resolvable:$true] %s716
      %722 = dma.vmem_to_hbm [thread:$0]  %s717, 512, %s4, [#allocation4], 128, 128, 8
    $region29: #{dqn_dual_forward_padded.1} parent=1 // pred_fallthru
      _
    // Predicated region
    $region30: #{dqn_dual_forward_padded.1} parent=1 // pred_check
      _
    $region31: #{dqn_dual_forward_padded.1} parent=1 // pred_check_branch
      %724 = sbr.rel (0) target = $region33
    $region32: #{dqn_dual_forward_padded.1} parent=1 // pred_region
      %s726 = ssub.s32 512, 512
      %727 = vsyncadd [#allocation9], %s726
      %s728 = sshll.u32 [#allocation8], 4
      %s729 = int_to_ptr.vmem [resolvable:$true] %s728
      %734 = dma.vmem_to_hbm [thread:$0]  %s729, 512, %s5, [#allocation9], 128, 128, 8
    $region33: #{dqn_dual_forward_padded.1} parent=1 // pred_fallthru
      _
    // Predicated region
    $region34: #{dqn_dual_forward_padded.1} parent=1 // pred_check
      _
    $region35: #{dqn_dual_forward_padded.1} parent=1 // pred_check_branch
      %736 = sbr.rel (0) target = $region37
    $region36: #{dqn_dual_forward_padded.1} parent=1 // pred_region
      %737 = dma.done [#allocation4], 512
    $region37: #{dqn_dual_forward_padded.1} parent=1 // pred_fallthru
      _
    // Predicated region
    $region38: #{dqn_dual_forward_padded.1} parent=1 // pred_check
      _
    $region39: #{dqn_dual_forward_padded.1} parent=1 // pred_check_branch
      %739 = sbr.rel (0) target = $region41
    $region40: #{dqn_dual_forward_padded.1} parent=1 // pred_region
      %740 = dma.done [#allocation9], 512
    $region41: #{dqn_dual_forward_padded.1} parent=1 // pred_fallthru
      _
    %741 = vsyncpa [#allocation3], 1
    %742 = vsyncpa [#allocation6], 1
    %743 = vsyncpa [#allocation4], 1
    %744 = vsyncpa [#allocation9], 1

</llo_original>
